<compile_context>
chip_gen: v5e
topology: v5e:2x2
jax: 0.10.0
libtpu: 0.0.40
codegen_flags: <defaults>
</compile_context>

<pallas_src>
import jax
import jax.numpy as jnp
from jax.experimental import pallas as pl
from jax.experimental.pallas import tpu as pltpu


# ---------------------------------------------------------------------------
# Tunables (chosen to be safe across v5e / v6e / v7x)
# ---------------------------------------------------------------------------
_WEIGHT_TILE_BUDGET = 24 << 20   # bytes for one double-buffered weight tile pair
_VMEM_LIMIT = 48 << 20           # > v5e 16 MiB scoped default, < v7x 64 MiB VMEM


def _round_up(x, m):
    return -(-x // m) * m


def _tile_and_pad(dim, max_tile, allow_overpad=False):
    """Pick a lane-aligned tile <= max_tile and a padded dim (multiple of it).

    Prefers a tile that divides round_up(dim, 128) (no extra padding).  If
    `allow_overpad` (reduction axis), takes the full max_tile and zero-pads the
    dim up to it whenever the best exact divisor would be < half of max_tile.
    """
    d128 = _round_up(dim, 128)
    cap = max(128, (min(max_tile, d128) // 128) * 128)
    best = 128
    for t in range(cap, 127, -128):
        if d128 % t == 0:
            best = t
            break
    if allow_overpad and best * 2 <= cap:
        return cap, _round_up(dim, cap)
    return best, d128


# ---------------------------------------------------------------------------
# Kernels
# ---------------------------------------------------------------------------
def _latent_kernel_f32(vox_ref, wpt_ref, latent_ref):
    """latent[:, l-tile] += voxels[:, k-tile] @ wp_t[k-tile, l-tile].

    f32 output: accumulate directly in the resident output block (no scratch).
    """
    @pl.when(pl.program_id(1) == 0)
    def _():
        latent_ref[...] = jnp.zeros_like(latent_ref)

    latent_ref[...] += jnp.dot(
        vox_ref[...].astype(wpt_ref.dtype), wpt_ref[...],
        preferred_element_type=jnp.float32)


def _latent_kernel_scratch(vox_ref, wpt_ref, latent_ref, acc_ref):
    """Same reduction, but with an f32 VMEM accumulator for non-f32 outputs."""
    k = pl.program_id(1)

    @pl.when(k == 0)
    def _():
        acc_ref[...] = jnp.zeros_like(acc_ref)

    acc_ref[...] += jnp.dot(
        vox_ref[...].astype(wpt_ref.dtype), wpt_ref[...],
        preferred_element_type=jnp.float32)

    @pl.when(k == pl.num_programs(1) - 1)
    def _():
        latent_ref[...] = acc_ref[...].astype(latent_ref.dtype)


def _image_kernel(latent_ref, wdt_ref, bias_ref, image_ref):
    """image[:, o-tile] = tanh(latent @ wd_t[:, o-tile] + bias[o-tile])."""
    z = jnp.dot(latent_ref[...].astype(wdt_ref.dtype), wdt_ref[...],
                preferred_element_type=jnp.float32)
    image_ref[...] = jnp.tanh(z + bias_ref[...]).astype(image_ref.dtype)


# ---------------------------------------------------------------------------
# One-time parameter prep (transpose + cast + pad; amortized across calls)
# ---------------------------------------------------------------------------
def prepare_fmri_decoder_params(proj_w, dec_w, dec_b, image_chw,
                                param_dtype=jnp.bfloat16):
    """
    proj_w : [n_latents, n_voxels]  (PyTorch nn.Linear weight, no bias)
    dec_w  : [C*H*W, n_latents]     (synthetic image-decoder weight)
    dec_b  : [C*H*W]
    """
    L, V = proj_w.shape
    C, H, W = image_chw
    O = C * H * W
    assert dec_w.shape == (O, L) and dec_b.shape == (O,)

    w_isz = jnp.dtype(param_dtype).itemsize

    # Parallel L axis (lets v7x's two TensorCores split the projection).
    tl, L_pad = _tile_and_pad(L, 512)
    # Voxel reduction tile: main tuning knob; keep the double-buffered weight
    # tile pair within budget and <= 4096 wide (zero-pad V up to a multiple).
    tk_max = max(128, _WEIGHT_TILE_BUDGET // (2 * tl * w_isz))
    tk, V_pad = _tile_and_pad(V, min(tk_max, 4096), allow_overpad=True)
    # Image output tile: lane-dense, as wide as the budget allows (<= 2048).
    tn_max = max(128, _WEIGHT_TILE_BUDGET // (2 * L_pad * w_isz))
    tn, O_pad = _tile_and_pad(O, min(tn_max, 2048))

    wp_t = jnp.pad(proj_w.astype(param_dtype).T,
                   ((0, V_pad - V), (0, L_pad - L)))              # [V_pad, L_pad]
    wd_t = jnp.pad(dec_w.astype(param_dtype).T,
                   ((0, L_pad - L), (0, O_pad - O)))              # [L_pad, O_pad]
    bias = jnp.pad(dec_b.astype(jnp.float32), (0, O_pad - O)).reshape(1, O_pad)

    return dict(wp_t=wp_t, wd_t=wd_t, bias=bias,
                dims=(V, L, O, C, H, W),
                pads=(V_pad, L_pad, O_pad),
                tiles=(tk, tl, tn),
                param_dtype=param_dtype)


# ---------------------------------------------------------------------------
# Forward
# ---------------------------------------------------------------------------
def fmri_decoder_forward(voxels, params, gen_image=True):
    V, L, O, C, H, W = params["dims"]
    V_pad, L_pad, O_pad = params["pads"]
    tk, tl, tn = params["tiles"]
    wp_t, wd_t, bias = params["wp_t"], params["wd_t"], params["bias"]

    B = voxels.shape[0]
    assert voxels.shape[1] == V
    out_dtype = voxels.dtype
    w_isz = jnp.dtype(params["param_dtype"]).itemsize
    o_isz = jnp.dtype(out_dtype).itemsize

    # Pad batch to a multiple of 8 sublanes; zero-pad the voxel reduction axis.
    B_pad = max(8, _round_up(B, 8))
    voxels_p = jnp.pad(voxels, ((0, B_pad - B), (0, V_pad - V)))

    nl, nk = L_pad // tl, V_pad // tk

    # ------------------- latent = voxels @ wp^T ------------------------------
    latent_cost = pl.CostEstimate(
        flops=2 * B_pad * V_pad * L_pad,
        transcendentals=0,
        bytes_accessed=(B_pad * V_pad * o_isz + V_pad * L_pad * w_isz
                        + B_pad * L_pad * o_isz))

    direct_f32 = out_dtype == jnp.float32
    latent_kernel = _latent_kernel_f32 if direct_f32 else _latent_kernel_scratch
    scratch = () if direct_f32 else (pltpu.VMEM((B_pad, tl), jnp.float32),)

    latent_p = pl.pallas_call(
        latent_kernel,
        out_shape=jax.ShapeDtypeStruct((B_pad, L_pad), out_dtype),
        grid_spec=pltpu.PrefetchScalarGridSpec(
            num_scalar_prefetch=0,
            grid=(nl, nk),                       # L parallel, voxel reduction last
            in_specs=[
                pl.BlockSpec((B_pad, tk), lambda l, k: (0, k)),
                pl.BlockSpec((tk, tl), lambda l, k: (k, l)),
            ],
            out_specs=pl.BlockSpec((B_pad, tl), lambda l, k: (0, l)),
            scratch_shapes=scratch),
        compiler_params=pltpu.CompilerParams(
            dimension_semantics=("parallel", "arbitrary"),
            vmem_limit_bytes=_VMEM_LIMIT),
        cost_estimate=latent_cost,
    )(voxels_p, wp_t)

    latent = latent_p[:B, :L]
    if not gen_image:
        return latent

    # ------------------- image = tanh(latent @ wd^T + b) ---------------------
    nj = O_pad // tn
    image_cost = pl.CostEstimate(
        flops=2 * B_pad * L_pad * O_pad,
        transcendentals=B_pad * O_pad,
        bytes_accessed=(B_pad * L_pad * o_isz + L_pad * O_pad * w_isz
                        + O_pad * 4 + B_pad * O_pad * o_isz))

    image_flat = pl.pallas_call(
        _image_kernel,
        out_shape=jax.ShapeDtypeStruct((B_pad, O_pad), out_dtype),
        grid_spec=pltpu.PrefetchScalarGridSpec(
            num_scalar_prefetch=0,
            grid=(nj,),
            in_specs=[
                pl.BlockSpec((B_pad, L_pad), lambda j: (0, 0)),
                pl.BlockSpec((L_pad, tn), lambda j: (0, j)),
                pl.BlockSpec((1, tn), lambda j: (0, j)),
            ],
            out_specs=pl.BlockSpec((B_pad, tn), lambda j: (0, j))),
        compiler_params=pltpu.CompilerParams(
            dimension_semantics=("parallel",),
            vmem_limit_bytes=_VMEM_LIMIT),
        cost_estimate=image_cost,
    )(latent_p, wd_t, bias)

    image = image_flat[:B, :O].reshape(B, C, H, W)    # NCHW, matches PyTorch
    return latent, image


# ---------------------------------------------------------------------------
# Main
# ---------------------------------------------------------------------------
if __name__ == "__main__":
    key = jax.random.PRNGKey(0)
    k1, k2, k3, k4 = jax.random.split(key, 4)

    B = 2
    n_voxels = 256
    n_latents = 128
    C, H, W = 4, 16, 16
    O = C * H * W

    voxels = jax.random.normal(k1, (B, n_voxels), dtype=jnp.float32)
    proj_w = jax.random.normal(k2, (n_latents, n_voxels), dtype=jnp.float32) * 0.05
    dec_w = jax.random.normal(k3, (O, n_latents), dtype=jnp.float32) * 0.05
    dec_b = jax.random.normal(k4, (O,), dtype=jnp.float32) * 0.01

    # Exact f32 (PyTorch-parity) reference.
    hi = jax.lax.Precision.HIGHEST
    latent_ref = jnp.dot(voxels, proj_w.T, precision=hi)
    image_ref = jnp.tanh(
        jnp.dot(latent_ref, dec_w.T, precision=hi) + dec_b).reshape(B, C, H, W)

    # --- f32 parameter path: closest to PyTorch numerics ---------------------
    params_f32 = prepare_fmri_decoder_params(
        proj_w, dec_w, dec_b, (C, H, W), param_dtype=jnp.float32)
    latent, image = fmri_decoder_forward(voxels, params_f32, gen_image=True)
    jax.block_until_ready((latent, image))
    assert latent.shape == (B, n_latents)
    assert image.shape == (B, C, H, W)
    assert jnp.allclose(latent, latent_ref, atol=1e-2, rtol=1e-2)
    assert jnp.allclose(image, image_ref, atol=1e-2, rtol=1e-2)

    latent_only = fmri_decoder_forward(voxels, params_f32, gen_image=False)
    jax.block_until_ready(latent_only)
    assert jnp.allclose(latent_only, latent_ref, atol=1e-2, rtol=1e-2)

    # --- bf16 weight-streaming path (default), checked vs. the f32 reference -
    params_bf16 = prepare_fmri_decoder_params(
        proj_w, dec_w, dec_b, (C, H, W), param_dtype=jnp.bfloat16)
    latent_b, image_b = fmri_decoder_forward(voxels, params_bf16, gen_image=True)
    jax.block_until_ready((latent_b, image_b))
    assert latent_b.shape == (B, n_latents)
    assert image_b.shape == (B, C, H, W)
    assert jnp.allclose(latent_b, latent_ref, atol=4e-2, rtol=4e-2)
    assert jnp.allclose(image_b, image_ref, atol=4e-2, rtol=4e-2)

    print("KERNEL_OK")
</pallas_src>

<mosaic_0001>
module attributes {stable_mosaic.version = 11 : i64} {
  func.func @_latent_kernel_f32(%arg0: i32, %arg1: i32, %arg2: memref<8x256xf32, #tpu.memory_space<vmem>>, %arg3: memref<256x128xf32, #tpu.memory_space<vmem>>, %arg4: memref<8x128xf32, #tpu.memory_space<vmem>>) attributes {dimension_semantics = [#tpu.dimension_semantics<parallel>, #tpu.dimension_semantics<arbitrary>], iteration_bounds = array<i64: 1, 1>, scalar_prefetch = 0 : i64, scratch_operands = 0 : i64, tpu.core_type = #tpu.core_type<tc>, window_params = [{transform_indices = @transform_0, window_bounds = array<i64: 8, 256>}, {transform_indices = @transform_1, window_bounds = array<i64: 256, 128>}, {transform_indices = @transform_2, window_bounds = array<i64: 8, 128>}]} {
    %c0_i32 = arith.constant 0 : i32
    %0 = arith.cmpi eq, %arg1, %c0_i32 : i32
    %1 = arith.extui %0 : i1 to i32
    %c0_i32_0 = arith.constant 0 : i32
    %2 = arith.cmpi ne, %1, %c0_i32_0 : i32
    scf.if %2 {
      %cst_8 = arith.constant 0.000000e+00 : f32
      %9 = vector.broadcast %cst_8 : f32 to vector<8x128xf32>
      %c0_9 = arith.constant 0 : index
      %c0_10 = arith.constant 0 : index
      %10 = vector.load %arg4[%c0_9, %c0_10] : memref<8x128xf32, #tpu.memory_space<vmem>>, vector<8x128xf32>
      tpu.vector_store %arg4[%c0_9, %c0_10], %9 {strides = array<i32>} : memref<8x128xf32, #tpu.memory_space<vmem>>, vector<8x128xf32>,
    } else {
    }
    %c0 = arith.constant 0 : index
    %c0_1 = arith.constant 0 : index
    %3 = vector.load %arg4[%c0, %c0_1] : memref<8x128xf32, #tpu.memory_space<vmem>>, vector<8x128xf32>
    %c0_2 = arith.constant 0 : index
    %c0_3 = arith.constant 0 : index
    %4 = vector.load %arg2[%c0_2, %c0_3] : memref<8x256xf32, #tpu.memory_space<vmem>>, vector<8x256xf32>
    %c0_4 = arith.constant 0 : index
    %c0_5 = arith.constant 0 : index
    %5 = vector.load %arg3[%c0_4, %c0_5] : memref<256x128xf32, #tpu.memory_space<vmem>>, vector<256x128xf32>
    %cst = arith.constant dense<0.000000e+00> : vector<8x128xf32>
    %6 = tpu.matmul %4, %5, %cst {dimension_numbers = #tpu.dot_dimension_numbers<[1], [0], [0], [1], [0, 0, 1, 1], [], []>} : vector<8x256xf32>, vector<256x128xf32>, vector<8x128xf32> -> vector<8x128xf32>
    %7 = arith.addf %3, %6 : vector<8x128xf32>
    %c0_6 = arith.constant 0 : index
    %c0_7 = arith.constant 0 : index
    %8 = vector.load %arg4[%c0_6, %c0_7] : memref<8x128xf32, #tpu.memory_space<vmem>>, vector<8x128xf32>
    tpu.vector_store %arg4[%c0_6, %c0_7], %7 {strides = array<i32>} : memref<8x128xf32, #tpu.memory_space<vmem>>, vector<8x128xf32>,
    return
  }
  func.func @transform_0(%arg0: i32, %arg1: i32) -> (i32, i32) {
    %c0_i32 = arith.constant 0 : i32
    %c0_i32_0 = arith.constant 0 : i32
    return %c0_i32, %arg1 : i32, i32
  }
  func.func @transform_1(%arg0: i32, %arg1: i32) -> (i32, i32) {
    %c0_i32 = arith.constant 0 : i32
    return %arg1, %arg0 : i32, i32
  }
  func.func @transform_2(%arg0: i32, %arg1: i32) -> (i32, i32) {
    %c0_i32 = arith.constant 0 : i32
    %c0_i32_0 = arith.constant 0 : i32
    return %c0_i32, %arg0 : i32, i32
  }
}

</mosaic_0001>

<llo_original>
// kernel: tpu_custom_call.1
$region0: #{tpu_custom_call.1}
  #allocation0 [shape = 'u32[]', space=smem, size = 0x4, offset = 0x4, fixed_abs, tag = 'smem constant byte address 0x4 - core index']
  #allocation1 [shape = 'u32[72,128]{1,0:T(1,128)}', space=vmem, size = 0x9000, scoped, tag = 'internal scratch']
  %s0 = inlined_call_operand.hbm [shape: f32[8,256], index: 0, kind: input, shape index: {}]
  %s1 = inlined_call_operand.hbm [shape: f32[256,128], index: 1, kind: input, shape index: {}]
  %s2 = inlined_call_operand.hbm [shape: f32[8,128], index: 2, kind: output, shape index: {}]
  %s3 = sld [smem:[#allocation0]]
  $region30: #{tpu_custom_call.1} parent=0
    _
  %s5 = ssub.s32 1, %s3
  %s6 = scalar_select 0, %s5, %s3
  $region1: #{tpu_custom_call.1} parent=0
    #allocation2 [shape = 'u8[8192]{0}', space=vmem, size = 0x2000, scoped, tag = 'input window, operand 0, single buffered']
    #allocation3 [shape = 's32[1]{0}', space=sflag, size = 0x4, scoped, tag = 'scoped memory for tpu_custom_call.1']
    #allocation4 [shape = 's32[1]{0}', space=sflag, size = 0x4, scoped, tag = 'scoped memory for tpu_custom_call.1']
    #allocation5 [shape = 'u8[131072]{0}', space=vmem, size = 0x20000, scoped, tag = 'input window, operand 1, single buffered']
    #allocation6 [shape = 's32[1]{0}', space=sflag, size = 0x4, scoped, tag = 'scoped memory for tpu_custom_call.1']
    #allocation7 [shape = 'u8[4096]{0}', space=vmem, size = 0x1000, scoped, tag = 'output window, operand 0, single buffered']
    %7 = vsyncpa [#allocation3], 0
    %8 = vsyncpa [#allocation6], 0
    %9 = vsyncpa [#allocation4], 0
    // Predicated region
    $region2: #{tpu_custom_call.1} parent=1 // pred_check
      _
    $region3: #{tpu_custom_call.1} parent=1 // pred_check_branch
      %11 = sbr.rel (0) target = $region5
    $region4: #{tpu_custom_call.1} parent=1 // pred_region
      %13 = vsyncadd [#allocation3], 0
      %s15 = sshll.u32 %s0, 4
      %s16 = int_to_ptr.hbm [resolvable:$true] %s15
      %s17 = sshll.u32 [#allocation2], 4
      %s18 = int_to_ptr.vmem [resolvable:$true] %s17
      %20 = dma.hbm_to_vmem [thread:$0]  %s16, 256, %s18, [#allocation3]
    $region5: #{tpu_custom_call.1} parent=1 // pred_fallthru
      _
    // Predicated region
    $region6: #{tpu_custom_call.1} parent=1 // pred_check
      _
    $region7: #{tpu_custom_call.1} parent=1 // pred_check_branch
      %22 = sbr.rel (0) target = $region9
    $region8: #{tpu_custom_call.1} parent=1 // pred_region
      %24 = vsyncadd [#allocation6], 0
      %s25 = sshll.u32 %s1, 4
      %s26 = int_to_ptr.hbm [resolvable:$true] %s25
      %s27 = sshll.u32 [#allocation5], 4
      %s28 = int_to_ptr.vmem [resolvable:$true] %s27
      %33 = dma.hbm_to_vmem [thread:$0]  %s26, 4096, %s28, [#allocation6], 128, 128, 8
    $region9: #{tpu_custom_call.1} parent=1 // pred_fallthru
      _
    // Predicated region
    $region10: #{tpu_custom_call.1} parent=1 // pred_check
      _
    $region11: #{tpu_custom_call.1} parent=1 // pred_check_branch
      %35 = sbr.rel (0) target = $region13
    $region12: #{tpu_custom_call.1} parent=1 // pred_region
      %37 = dma.done [#allocation3], 256
    $region13: #{tpu_custom_call.1} parent=1 // pred_fallthru
      _
    // Predicated region
    $region14: #{tpu_custom_call.1} parent=1 // pred_check
      _
    $region15: #{tpu_custom_call.1} parent=1 // pred_check_branch
      %39 = sbr.rel (0) target = $region17
    $region16: #{tpu_custom_call.1} parent=1 // pred_region
      %41 = dma.done [#allocation6], 4096
    $region17: #{tpu_custom_call.1} parent=1 // pred_fallthru
      _
    %p42 = scmp.eq.s32.totalorder 0, 0
    // Predicated region
    $region18: #{tpu_custom_call.1} parent=1 // pred_check
      %p43 = pneg %p42
    $region19: #{tpu_custom_call.1} parent=1 // pred_check_branch
      %45 = sbr.rel (%p43) target = $region21
    $region20: #{tpu_custom_call.1} parent=1 // pred_region
      %46 = vst [vmem:[#allocation7] sm:$0xff] 0.0
    $region21: #{tpu_custom_call.1} parent=1 // pred_fallthru
      _
    %v47 = vld [vmem:[#allocation7] sm:$0xff]
    %v48 = vld [vmem:[#allocation2] sm:$0xff]
    %v49 = vld [vmem:[#allocation2 + $0x8] sm:$0xff]
    %v50 = vld [vmem:[#allocation5] sm:$0xff]
    %v51 = vld [vmem:[#allocation5 + $0x8] sm:$0xff]
    %v52 = vld [vmem:[#allocation5 + $0x10] sm:$0xff]
    %v53 = vld [vmem:[#allocation5 + $0x18] sm:$0xff]
    %v54 = vld [vmem:[#allocation5 + $0x20] sm:$0xff]
    %v55 = vld [vmem:[#allocation5 + $0x28] sm:$0xff]
    %v56 = vld [vmem:[#allocation5 + $0x30] sm:$0xff]
    %v57 = vld [vmem:[#allocation5 + $0x38] sm:$0xff]
    %v58 = vld [vmem:[#allocation5 + $0x40] sm:$0xff]
    %v59 = vld [vmem:[#allocation5 + $0x48] sm:$0xff]
    %v60 = vld [vmem:[#allocation5 + $0x50] sm:$0xff]
    %v61 = vld [vmem:[#allocation5 + $0x58] sm:$0xff]
    %v62 = vld [vmem:[#allocation5 + $0x60] sm:$0xff]
    %v63 = vld [vmem:[#allocation5 + $0x68] sm:$0xff]
    %v64 = vld [vmem:[#allocation5 + $0x70] sm:$0xff]
    %v65 = vld [vmem:[#allocation5 + $0x78] sm:$0xff]
    %v66 = vld [vmem:[#allocation5 + $0x80] sm:$0xff]
    %v67 = vld [vmem:[#allocation5 + $0x88] sm:$0xff]
    %v68 = vld [vmem:[#allocation5 + $0x90] sm:$0xff]
    %v69 = vld [vmem:[#allocation5 + $0x98] sm:$0xff]
    %v70 = vld [vmem:[#allocation5 + $0xa0] sm:$0xff]
    %v71 = vld [vmem:[#allocation5 + $0xa8] sm:$0xff]
    %v72 = vld [vmem:[#allocation5 + $0xb0] sm:$0xff]
    %v73 = vld [vmem:[#allocation5 + $0xb8] sm:$0xff]
    %v74 = vld [vmem:[#allocation5 + $0xc0] sm:$0xff]
    %v75 = vld [vmem:[#allocation5 + $0xc8] sm:$0xff]
    %v76 = vld [vmem:[#allocation5 + $0xd0] sm:$0xff]
    %v77 = vld [vmem:[#allocation5 + $0xd8] sm:$0xff]
    %v78 = vld [vmem:[#allocation5 + $0xe0] sm:$0xff]
    %v79 = vld [vmem:[#allocation5 + $0xe8] sm:$0xff]
    %v80 = vld [vmem:[#allocation5 + $0xf0] sm:$0xff]
    %v81 = vld [vmem:[#allocation5 + $0xf8] sm:$0xff]
    %82 = vmatpush.msra.mxu0 %v65
    %83 = vmatpush.msra.mxu0 %v64
    %84 = vmatpush.msra.mxu0 %v63
    %85 = vmatpush.msra.mxu0 %v62
    %86 = vmatpush.msra.mxu0 %v61
    %87 = vmatpush.msra.mxu0 %v60
    %88 = vmatpush.msra.mxu0 %v59
    %89 = vmatpush.msra.mxu0 %v58
    %90 = vmatpush.msra.mxu0 %v57
    %91 = vmatpush.msra.mxu0 %v56
    %92 = vmatpush.msra.mxu0 %v55
    %93 = vmatpush.msra.mxu0 %v54
    %94 = vmatpush.msra.mxu0 %v53
    %95 = vmatpush.msra.mxu0 %v52
    %96 = vmatpush.msra.mxu0 %v51
    %97 = vmatpush.msra.mxu0 %v50
    %98 = vmatmul.f32.gmra.mxu0 %v48
    %v99 = vpop.f32.mrf.mxu0
    %v100 = vadd.f32 0.0, %v99
    %101 = vdwg.mxu0
    %102 = vmatpush.msra.mxu0 %v81
    %103 = vmatpush.msra.mxu0 %v80
    %104 = vmatpush.msra.mxu0 %v79
    %105 = vmatpush.msra.mxu0 %v78
    %106 = vmatpush.msra.mxu0 %v77
    %107 = vmatpush.msra.mxu0 %v76
    %108 = vmatpush.msra.mxu0 %v75
    %109 = vmatpush.msra.mxu0 %v74
    %110 = vmatpush.msra.mxu0 %v73
    %111 = vmatpush.msra.mxu0 %v72
    %112 = vmatpush.msra.mxu0 %v71
    %113 = vmatpush.msra.mxu0 %v70
    %114 = vmatpush.msra.mxu0 %v69
    %115 = vmatpush.msra.mxu0 %v68
    %116 = vmatpush.msra.mxu0 %v67
    %117 = vmatpush.msra.mxu0 %v66
    %118 = vmatmul.f32.gmra.mxu0 %v49
    %v119 = vpop.f32.mrf.mxu0
    %v120 = vadd.f32 %v100, %v119
    %121 = vdwg.mxu0
    %v122 = vadd.f32 %v47, %v120
    %123 = vst [vmem:[#allocation7] sm:$0xff] %v122
    // Predicated region
    $region22: #{tpu_custom_call.1} parent=1 // pred_check
      _
    $region23: #{tpu_custom_call.1} parent=1 // pred_check_branch
      %125 = sbr.rel (0) target = $region25
    $region24: #{tpu_custom_call.1} parent=1 // pred_region
      %127 = vsyncadd [#allocation4], 0
      %s129 = sshll.u32 [#allocation7], 4
      %s130 = int_to_ptr.vmem [resolvable:$true] %s129
      %s131 = sshll.u32 %s2, 4
      %s132 = int_to_ptr.hbm [resolvable:$true] %s131
      %134 = dma.vmem_to_hbm [thread:$0]  %s130, 128, %s132, [#allocation4]
    $region25: #{tpu_custom_call.1} parent=1 // pred_fallthru
      _
    // Predicated region
    $region26: #{tpu_custom_call.1} parent=1 // pred_check
      _
    $region27: #{tpu_custom_call.1} parent=1 // pred_check_branch
      %136 = sbr.rel (0) target = $region29
    $region28: #{tpu_custom_call.1} parent=1 // pred_region
      %138 = dma.done [#allocation4], 128
    $region29: #{tpu_custom_call.1} parent=1 // pred_fallthru
      _
    %139 = vsyncpa [#allocation3], 1
    %140 = vsyncpa [#allocation6], 1
    %141 = vsyncpa [#allocation4], 1

</llo_original>
